<compile_context>
chip_gen: v6e
topology: v6e:2x2x1
jax: 0.10.0
libtpu: 0.0.40
codegen_flags: <defaults>
</compile_context>

<pallas_src>
import functools

import jax
import jax.numpy as jnp
import numpy as np
from jax import lax
from jax.experimental import pallas as pl
from jax.experimental.pallas import tpu as pltpu


_SUB_ROWS = 16                  # rows per in-register sub-chunk (2 sublane groups)
_VMEM_TARGET_BYTES = 4 << 20    # patch-tile budget per block (x2 for double buffering)


def _nps_kernel(coef_ref, patch_ref, out_ref, *,
                n_colors, tile_rows, sub_rows, s1, s2, need_mask):
    # coef_ref : SMEM (4*N,) f32 -- per color n: [2*c'_0, 2*c'_1, 2*c'_2, |c'|^2 + 1e-6]
    # patch_ref: VMEM (3, TR, S2) f32 -- row-tile of the patch, channels leading.
    # out_ref  : VMEM (1, 8, S2) f32 -- sublane-folded partial sum for this block.
    block_row0 = pl.program_id(0) * tile_rows
    n_sub = tile_rows // sub_rows

    if need_mask:
        local_rows = lax.broadcasted_iota(jnp.int32, (sub_rows, s2), 0)

    def body(i, acc):
        r0 = pl.multiple_of(i * sub_rows, sub_rows)
        chunk = patch_ref[:, pl.ds(r0, sub_rows), :]          # (3, sub_rows, S2)
        p0, p1, p2 = chunk[0], chunk[1], chunk[2]
        psq = p0 * p0 + p1 * p1 + p2 * p2                     # once per pixel

        dmin2 = None
        for n in range(n_colors):                             # static unroll, scalar SMEM reads
            a0 = coef_ref[4 * n + 0]
            a1 = coef_ref[4 * n + 1]
            a2 = coef_ref[4 * n + 2]
            kn = coef_ref[4 * n + 3]
            d2 = (psq + kn) - (p0 * a0 + p1 * a1 + p2 * a2)
            dmin2 = d2 if dmin2 is None else jnp.minimum(dmin2, d2)

        # Clamp tiny negatives from cancellation, then one sqrt per pixel.
        dmin = jnp.sqrt(jnp.maximum(dmin2, 0.0))

        if need_mask:
            # Only the ragged last block actually has rows >= s1; the select is
            # a single pass over the already-reduced-over-colors map.
            valid = (block_row0 + r0 + local_rows) < s1
            dmin = jnp.where(valid, dmin, 0.0)

        # Sublane-aligned fold (sub_rows, S2) -> (8, S2): pure vreg adds.
        part = dmin[0:8, :]
        for g in range(1, sub_rows // 8):
            part = part + dmin[g * 8:(g + 1) * 8, :]
        return acc + part

    acc = lax.fori_loop(0, n_sub, body, jnp.zeros((8, s2), jnp.float32))
    out_ref[0] = acc


def _choose_tile_rows(s1, s2, sub_rows, target_bytes):
    """Rows per grid block: as large as the VMEM budget allows, with an even
    block count (>=2) so both v7x TensorCores get balanced work."""
    lane_cols = pl.cdiv(s2, 128) * 128
    row_bytes = 3 * lane_cols * 4
    cap = max(sub_rows, (target_bytes // row_bytes) // sub_rows * sub_rows)
    nblocks = 2
    while True:
        tr = pl.cdiv(pl.cdiv(s1, nblocks), sub_rows) * sub_rows
        if tr <= cap or tr <= sub_rows:
            return tr
        nblocks += 2


@functools.partial(jax.jit, static_argnames=("use_pallas",))
def nps_score(adv_patch, printability_colors, *, use_pallas=None):
    """adv_patch: (3, H, W) f32; printability_colors: (N, 3) f32 -> scalar f32."""
    c, s1, s2 = adv_patch.shape
    assert c == 3, "adv_patch must be (3, H, W)"
    n_colors = printability_colors.shape[0]
    denom = float(c * s1 * s2)                 # torch.numel(adv_patch)

    patch = adv_patch.astype(jnp.float32)
    colors = printability_colors.astype(jnp.float32)

    if use_pallas is None:
        use_pallas = (s1 * s2) >= 4096         # tiny patches: launch-overhead bound

    if not use_pallas:
        # Small-size fast path: pure JAX (same math, XLA fusion is enough here).
        d = patch[None] - colors[:, :, None, None] + 1e-06
        d = jnp.sum(d * d, axis=1) + 1e-06
        d = jnp.sqrt(d)
        return jnp.sum(jnp.min(d, axis=0)) / jnp.float32(denom)

    # Fold the +1e-6 eps into the color table and expand the squared distance:
    #   dist^2 = |p|^2 - p . (2 c') + (|c'|^2 + 1e-6),  c' = color - 1e-6
    cp = colors - 1e-06
    coef = jnp.concatenate(
        [2.0 * cp, (jnp.sum(cp * cp, axis=1) + 1e-06)[:, None]], axis=1
    ).reshape(-1)                              # (4N,), SMEM-resident scalar table

    sub_rows = _SUB_ROWS
    tr = _choose_tile_rows(s1, s2, sub_rows, _VMEM_TARGET_BYTES)
    grid = (pl.cdiv(s1, tr),)
    need_mask = (grid[0] * tr != s1)           # ragged last row-block only

    kernel = functools.partial(
        _nps_kernel, n_colors=n_colors, tile_rows=tr, sub_rows=sub_rows,
        s1=s1, s2=s2, need_mask=need_mask)

    partials = pl.pallas_call(
        kernel,
        out_shape=jax.ShapeDtypeStruct((grid[0], 8, s2), jnp.float32),
        grid_spec=pltpu.PrefetchScalarGridSpec(
            num_scalar_prefetch=0,
            grid=grid,
            in_specs=[
                # Tiny (4N,) coefficient table: whole array resident in SMEM.
                pl.BlockSpec(memory_space=pltpu.MemorySpace.SMEM),
                # Patch in its native (3, H, W) layout: one row-tile per step.
                pl.BlockSpec((3, tr, s2), lambda i: (0, i, 0)),
            ],
            out_specs=pl.BlockSpec((1, 8, s2), lambda i: (i, 0, 0)),
        ),
        compiler_params=pltpu.CompilerParams(
            # Independent per-block partials -> safe to shard across the two
            # v7x TensorCores; harmless on single-TC v5e/v6e.
            dimension_semantics=("parallel",),
        ),
    )(coef, patch)

    return jnp.sum(partials) / jnp.float32(denom)


def nps_reference(adv_patch, printability_array):
    # Pure-JAX mirror of the PyTorch forward (uses the broadcast (N,3,S,S) array).
    color_dist = adv_patch[None] - printability_array + 1e-06
    color_dist = color_dist ** 2
    color_dist = jnp.sum(color_dist, axis=1) + 1e-06
    color_dist = jnp.sqrt(color_dist)
    color_dist_prod = jnp.min(color_dist, axis=0)
    return jnp.sum(color_dist_prod) / adv_patch.size


def make_printability_array(colors, side):
    # Mirrors NPSCalculator.get_printability_array (reference only).
    # TODO(synk): the original reads colors from a printability file; here the
    # raw (N,3) color table is built in-script instead of doing file I/O.
    colors = np.asarray(colors, dtype=np.float32)            # (N, 3)
    pa = np.broadcast_to(colors[:, :, None, None], (colors.shape[0], 3, side, side))
    return jnp.asarray(np.ascontiguousarray(pa), dtype=jnp.float32)


if __name__ == "__main__":
    # Primary small test (typical tiny-patch usage), forced through the kernel.
    side = 16
    n_colors = 8
    key = jax.random.PRNGKey(0)
    k_patch, k_colors = jax.random.split(key)

    adv_patch = jax.random.uniform(k_patch, (3, side, side), dtype=jnp.float32)
    color_triplets = jax.random.uniform(k_colors, (n_colors, 3), dtype=jnp.float32)

    out = jax.block_until_ready(nps_score(adv_patch, color_triplets, use_pallas=True))
    ref = nps_reference(adv_patch, make_printability_array(np.asarray(color_triplets), side))
    np.testing.assert_allclose(np.asarray(out), np.asarray(ref), rtol=1e-5, atol=1e-6)

    # Secondary test: realistic patch/table size — exercises 2 row-blocks
    # ("parallel" axis), the ragged-row mask, and a 30-color table.
    side2, n2 = 300, 30
    k1, k2 = jax.random.split(jax.random.PRNGKey(1))
    adv_patch2 = jax.random.uniform(k1, (3, side2, side2), dtype=jnp.float32)
    colors2 = jax.random.uniform(k2, (n2, 3), dtype=jnp.float32)

    out2 = jax.block_until_ready(nps_score(adv_patch2, colors2))
    ref2 = nps_reference(adv_patch2, make_printability_array(np.asarray(colors2), side2))
    np.testing.assert_allclose(np.asarray(out2), np.asarray(ref2), rtol=2e-5, atol=1e-6)

    # Fast-path sanity check (tiny patch auto-routes to pure JAX).
    out3 = jax.block_until_ready(nps_score(adv_patch, color_triplets))
    np.testing.assert_allclose(np.asarray(out3), np.asarray(ref), rtol=1e-5, atol=1e-6)

    print("KERNEL_OK")
</pallas_src>

<mosaic_0001>
module attributes {stable_mosaic.version = 11 : i64} {
  func.func @_nps_kernel(%arg0: i32, %arg1: memref<32xf32, #tpu.memory_space<smem>>, %arg2: memref<3x16x16xf32, #tpu.memory_space<vmem>>, %arg3: memref<1x8x16xf32, #tpu.memory_space<vmem>>) attributes {dimension_semantics = [#tpu.dimension_semantics<parallel>], iteration_bounds = array<i64: 1>, scalar_prefetch = 0 : i64, scratch_operands = 0 : i64, tpu.core_type = #tpu.core_type<tc>, window_params = [{transform_indices = @transform_0, window_bounds = array<i64: 32>}, {transform_indices = @transform_1, window_bounds = array<i64: 3, 16, 16>}, {transform_indices = @transform_2, window_bounds = array<i64: 1, 8, 16>}]} {
    %cst = arith.constant 0.000000e+00 : f32
    %0 = vector.broadcast %cst : f32 to vector<8x16xf32>
    %c0_i32 = arith.constant 0 : i32
    %c16_i32 = arith.constant 16 : i32
    %1 = arith.muli %c0_i32, %c16_i32 : i32
    %2 = tpu.assume_multiple %1, 16 : i32
    %c0 = arith.constant 0 : index
    %3 = arith.index_cast %2 : i32 to index
    %c0_0 = arith.constant 0 : index
    %4 = vector.load %arg2[%c0, %3, %c0_0] : memref<3x16x16xf32, #tpu.memory_space<vmem>>, vector<3x16x16xf32>
    %5 = vector.extract_strided_slice %4 {offsets = [0, 0, 0], sizes = [1, 16, 16], strides = [1, 1, 1]} : vector<3x16x16xf32> to vector<1x16x16xf32>
    %6 = vector.shape_cast %5 : vector<1x16x16xf32> to vector<16x16xf32>
    %7 = vector.extract_strided_slice %4 {offsets = [1, 0, 0], sizes = [1, 16, 16], strides = [1, 1, 1]} : vector<3x16x16xf32> to vector<1x16x16xf32>
    %8 = vector.shape_cast %7 : vector<1x16x16xf32> to vector<16x16xf32>
    %9 = vector.extract_strided_slice %4 {offsets = [2, 0, 0], sizes = [1, 16, 16], strides = [1, 1, 1]} : vector<3x16x16xf32> to vector<1x16x16xf32>
    %10 = vector.shape_cast %9 : vector<1x16x16xf32> to vector<16x16xf32>
    %11 = arith.mulf %6, %6 : vector<16x16xf32>
    %12 = arith.mulf %8, %8 : vector<16x16xf32>
    %13 = arith.addf %11, %12 : vector<16x16xf32>
    %14 = arith.mulf %10, %10 : vector<16x16xf32>
    %15 = arith.addf %13, %14 : vector<16x16xf32>
    %c0_1 = arith.constant 0 : index
    %16 = memref.load %arg1[%c0_1] : memref<32xf32, #tpu.memory_space<smem>>
    %c1 = arith.constant 1 : index
    %17 = memref.load %arg1[%c1] : memref<32xf32, #tpu.memory_space<smem>>
    %c2 = arith.constant 2 : index
    %18 = memref.load %arg1[%c2] : memref<32xf32, #tpu.memory_space<smem>>
    %c3 = arith.constant 3 : index
    %19 = memref.load %arg1[%c3] : memref<32xf32, #tpu.memory_space<smem>>
    %20 = vector.broadcast %19 : f32 to vector<16x16xf32>
    %21 = arith.addf %15, %20 : vector<16x16xf32>
    %22 = vector.broadcast %16 : f32 to vector<16x16xf32>
    %23 = arith.mulf %6, %22 : vector<16x16xf32>
    %24 = vector.broadcast %17 : f32 to vector<16x16xf32>
    %25 = arith.mulf %8, %24 : vector<16x16xf32>
    %26 = arith.addf %23, %25 : vector<16x16xf32>
    %27 = vector.broadcast %18 : f32 to vector<16x16xf32>
    %28 = arith.mulf %10, %27 : vector<16x16xf32>
    %29 = arith.addf %26, %28 : vector<16x16xf32>
    %30 = arith.subf %21, %29 : vector<16x16xf32>
    %c4 = arith.constant 4 : index
    %31 = memref.load %arg1[%c4] : memref<32xf32, #tpu.memory_space<smem>>
    %c5 = arith.constant 5 : index
    %32 = memref.load %arg1[%c5] : memref<32xf32, #tpu.memory_space<smem>>
    %c6 = arith.constant 6 : index
    %33 = memref.load %arg1[%c6] : memref<32xf32, #tpu.memory_space<smem>>
    %c7 = arith.constant 7 : index
    %34 = memref.load %arg1[%c7] : memref<32xf32, #tpu.memory_space<smem>>
    %35 = vector.broadcast %34 : f32 to vector<16x16xf32>
    %36 = arith.addf %15, %35 : vector<16x16xf32>
    %37 = vector.broadcast %31 : f32 to vector<16x16xf32>
    %38 = arith.mulf %6, %37 : vector<16x16xf32>
    %39 = vector.broadcast %32 : f32 to vector<16x16xf32>
    %40 = arith.mulf %8, %39 : vector<16x16xf32>
    %41 = arith.addf %38, %40 : vector<16x16xf32>
    %42 = vector.broadcast %33 : f32 to vector<16x16xf32>
    %43 = arith.mulf %10, %42 : vector<16x16xf32>
    %44 = arith.addf %41, %43 : vector<16x16xf32>
    %45 = arith.subf %36, %44 : vector<16x16xf32>
    %46 = arith.minimumf %30, %45 : vector<16x16xf32>
    %c8 = arith.constant 8 : index
    %47 = memref.load %arg1[%c8] : memref<32xf32, #tpu.memory_space<smem>>
    %c9 = arith.constant 9 : index
    %48 = memref.load %arg1[%c9] : memref<32xf32, #tpu.memory_space<smem>>
    %c10 = arith.constant 10 : index
    %49 = memref.load %arg1[%c10] : memref<32xf32, #tpu.memory_space<smem>>
    %c11 = arith.constant 11 : index
    %50 = memref.load %arg1[%c11] : memref<32xf32, #tpu.memory_space<smem>>
    %51 = vector.broadcast %50 : f32 to vector<16x16xf32>
    %52 = arith.addf %15, %51 : vector<16x16xf32>
    %53 = vector.broadcast %47 : f32 to vector<16x16xf32>
    %54 = arith.mulf %6, %53 : vector<16x16xf32>
    %55 = vector.broadcast %48 : f32 to vector<16x16xf32>
    %56 = arith.mulf %8, %55 : vector<16x16xf32>
    %57 = arith.addf %54, %56 : vector<16x16xf32>
    %58 = vector.broadcast %49 : f32 to vector<16x16xf32>
    %59 = arith.mulf %10, %58 : vector<16x16xf32>
    %60 = arith.addf %57, %59 : vector<16x16xf32>
    %61 = arith.subf %52, %60 : vector<16x16xf32>
    %62 = arith.minimumf %46, %61 : vector<16x16xf32>
    %c12 = arith.constant 12 : index
    %63 = memref.load %arg1[%c12] : memref<32xf32, #tpu.memory_space<smem>>
    %c13 = arith.constant 13 : index
    %64 = memref.load %arg1[%c13] : memref<32xf32, #tpu.memory_space<smem>>
    %c14 = arith.constant 14 : index
    %65 = memref.load %arg1[%c14] : memref<32xf32, #tpu.memory_space<smem>>
    %c15 = arith.constant 15 : index
    %66 = memref.load %arg1[%c15] : memref<32xf32, #tpu.memory_space<smem>>
    %67 = vector.broadcast %66 : f32 to vector<16x16xf32>
    %68 = arith.addf %15, %67 : vector<16x16xf32>
    %69 = vector.broadcast %63 : f32 to vector<16x16xf32>
    %70 = arith.mulf %6, %69 : vector<16x16xf32>
    %71 = vector.broadcast %64 : f32 to vector<16x16xf32>
    %72 = arith.mulf %8, %71 : vector<16x16xf32>
    %73 = arith.addf %70, %72 : vector<16x16xf32>
    %74 = vector.broadcast %65 : f32 to vector<16x16xf32>
    %75 = arith.mulf %10, %74 : vector<16x16xf32>
    %76 = arith.addf %73, %75 : vector<16x16xf32>
    %77 = arith.subf %68, %76 : vector<16x16xf32>
    %78 = arith.minimumf %62, %77 : vector<16x16xf32>
    %c16 = arith.constant 16 : index
    %79 = memref.load %arg1[%c16] : memref<32xf32, #tpu.memory_space<smem>>
    %c17 = arith.constant 17 : index
    %80 = memref.load %arg1[%c17] : memref<32xf32, #tpu.memory_space<smem>>
    %c18 = arith.constant 18 : index
    %81 = memref.load %arg1[%c18] : memref<32xf32, #tpu.memory_space<smem>>
    %c19 = arith.constant 19 : index
    %82 = memref.load %arg1[%c19] : memref<32xf32, #tpu.memory_space<smem>>
    %83 = vector.broadcast %82 : f32 to vector<16x16xf32>
    %84 = arith.addf %15, %83 : vector<16x16xf32>
    %85 = vector.broadcast %79 : f32 to vector<16x16xf32>
    %86 = arith.mulf %6, %85 : vector<16x16xf32>
    %87 = vector.broadcast %80 : f32 to vector<16x16xf32>
    %88 = arith.mulf %8, %87 : vector<16x16xf32>
    %89 = arith.addf %86, %88 : vector<16x16xf32>
    %90 = vector.broadcast %81 : f32 to vector<16x16xf32>
    %91 = arith.mulf %10, %90 : vector<16x16xf32>
    %92 = arith.addf %89, %91 : vector<16x16xf32>
    %93 = arith.subf %84, %92 : vector<16x16xf32>
    %94 = arith.minimumf %78, %93 : vector<16x16xf32>
    %c20 = arith.constant 20 : index
    %95 = memref.load %arg1[%c20] : memref<32xf32, #tpu.memory_space<smem>>
    %c21 = arith.constant 21 : index
    %96 = memref.load %arg1[%c21] : memref<32xf32, #tpu.memory_space<smem>>
    %c22 = arith.constant 22 : index
    %97 = memref.load %arg1[%c22] : memref<32xf32, #tpu.memory_space<smem>>
    %c23 = arith.constant 23 : index
    %98 = memref.load %arg1[%c23] : memref<32xf32, #tpu.memory_space<smem>>
    %99 = vector.broadcast %98 : f32 to vector<16x16xf32>
    %100 = arith.addf %15, %99 : vector<16x16xf32>
    %101 = vector.broadcast %95 : f32 to vector<16x16xf32>
    %102 = arith.mulf %6, %101 : vector<16x16xf32>
    %103 = vector.broadcast %96 : f32 to vector<16x16xf32>
    %104 = arith.mulf %8, %103 : vector<16x16xf32>
    %105 = arith.addf %102, %104 : vector<16x16xf32>
    %106 = vector.broadcast %97 : f32 to vector<16x16xf32>
    %107 = arith.mulf %10, %106 : vector<16x16xf32>
    %108 = arith.addf %105, %107 : vector<16x16xf32>
    %109 = arith.subf %100, %108 : vector<16x16xf32>
    %110 = arith.minimumf %94, %109 : vector<16x16xf32>
    %c24 = arith.constant 24 : index
    %111 = memref.load %arg1[%c24] : memref<32xf32, #tpu.memory_space<smem>>
    %c25 = arith.constant 25 : index
    %112 = memref.load %arg1[%c25] : memref<32xf32, #tpu.memory_space<smem>>
    %c26 = arith.constant 26 : index
    %113 = memref.load %arg1[%c26] : memref<32xf32, #tpu.memory_space<smem>>
    %c27 = arith.constant 27 : index
    %114 = memref.load %arg1[%c27] : memref<32xf32, #tpu.memory_space<smem>>
    %115 = vector.broadcast %114 : f32 to vector<16x16xf32>
    %116 = arith.addf %15, %115 : vector<16x16xf32>
    %117 = vector.broadcast %111 : f32 to vector<16x16xf32>
    %118 = arith.mulf %6, %117 : vector<16x16xf32>
    %119 = vector.broadcast %112 : f32 to vector<16x16xf32>
    %120 = arith.mulf %8, %119 : vector<16x16xf32>
    %121 = arith.addf %118, %120 : vector<16x16xf32>
    %122 = vector.broadcast %113 : f32 to vector<16x16xf32>
    %123 = arith.mulf %10, %122 : vector<16x16xf32>
    %124 = arith.addf %121, %123 : vector<16x16xf32>
    %125 = arith.subf %116, %124 : vector<16x16xf32>
    %126 = arith.minimumf %110, %125 : vector<16x16xf32>
    %c28 = arith.constant 28 : index
    %127 = memref.load %arg1[%c28] : memref<32xf32, #tpu.memory_space<smem>>
    %c29 = arith.constant 29 : index
    %128 = memref.load %arg1[%c29] : memref<32xf32, #tpu.memory_space<smem>>
    %c30 = arith.constant 30 : index
    %129 = memref.load %arg1[%c30] : memref<32xf32, #tpu.memory_space<smem>>
    %c31 = arith.constant 31 : index
    %130 = memref.load %arg1[%c31] : memref<32xf32, #tpu.memory_space<smem>>
    %131 = vector.broadcast %130 : f32 to vector<16x16xf32>
    %132 = arith.addf %15, %131 : vector<16x16xf32>
    %133 = vector.broadcast %127 : f32 to vector<16x16xf32>
    %134 = arith.mulf %6, %133 : vector<16x16xf32>
    %135 = vector.broadcast %128 : f32 to vector<16x16xf32>
    %136 = arith.mulf %8, %135 : vector<16x16xf32>
    %137 = arith.addf %134, %136 : vector<16x16xf32>
    %138 = vector.broadcast %129 : f32 to vector<16x16xf32>
    %139 = arith.mulf %10, %138 : vector<16x16xf32>
    %140 = arith.addf %137, %139 : vector<16x16xf32>
    %141 = arith.subf %132, %140 : vector<16x16xf32>
    %142 = arith.minimumf %126, %141 : vector<16x16xf32>
    %cst_2 = arith.constant 0.000000e+00 : f32
    %143 = vector.broadcast %cst_2 : f32 to vector<16x16xf32>
    %144 = arith.maximumf %142, %143 : vector<16x16xf32>
    %145 = math.sqrt %144 : vector<16x16xf32>
    %146 = vector.extract_strided_slice %145 {offsets = [0, 0], sizes = [8, 16], strides = [1, 1]} : vector<16x16xf32> to vector<8x16xf32>
    %147 = vector.extract_strided_slice %145 {offsets = [8, 0], sizes = [8, 16], strides = [1, 1]} : vector<16x16xf32> to vector<8x16xf32>
    %148 = arith.addf %146, %147 : vector<8x16xf32>
    %149 = arith.addf %0, %148 : vector<8x16xf32>
    %c1_i32 = arith.constant 1 : i32
    %c0_3 = arith.constant 0 : index
    %c0_4 = arith.constant 0 : index
    %c0_5 = arith.constant 0 : index
    %150 = vector.load %arg3[%c0_3, %c0_4, %c0_5] : memref<1x8x16xf32, #tpu.memory_space<vmem>>, vector<1x8x16xf32>
    %151 = vector.shape_cast %150 : vector<1x8x16xf32> to vector<8x16xf32>
    %152 = vector.shape_cast %149 : vector<8x16xf32> to vector<1x8x16xf32>
    tpu.vector_store %arg3[%c0_3, %c0_4, %c0_5], %152 {strides = array<i32>} : memref<1x8x16xf32, #tpu.memory_space<vmem>>, vector<1x8x16xf32>,
    return
  }
  func.func @transform_0(%arg0: i32) -> i32 {
    %c0_i32 = arith.constant 0 : i32
    %c0_i32_0 = arith.constant 0 : i32
    return %c0_i32 : i32
  }
  func.func @transform_1(%arg0: i32) -> (i32, i32, i32) {
    %c0_i32 = arith.constant 0 : i32
    %c0_i32_0 = arith.constant 0 : i32
    %c0_i32_1 = arith.constant 0 : i32
    return %c0_i32, %arg0, %c0_i32_0 : i32, i32, i32
  }
  func.func @transform_2(%arg0: i32) -> (i32, i32, i32) {
    %c0_i32 = arith.constant 0 : i32
    %c0_i32_0 = arith.constant 0 : i32
    %c0_i32_1 = arith.constant 0 : i32
    return %arg0, %c0_i32, %c0_i32_0 : i32, i32, i32
  }
}

</mosaic_0001>

<llo_original>
// kernel: nps_score.1
$region0: #{nps_score.1}
  #allocation0 [shape = 'u32[]', space=smem, size = 0x4, offset = 0x4, fixed_abs, tag = 'smem constant byte address 0x4 - core index']
  #allocation1 [shape = 'u32[144,128]{1,0:T(1,128)}', space=vmem, size = 0x12000, scoped, tag = 'internal scratch']
  %s0 = inlined_call_operand.vmem [shape: f32[32], index: 0, kind: input, shape index: {}]
  %s1 = inlined_call_operand.hbm [shape: f32[3,16,16], index: 1, kind: input, shape index: {}]
  %s2 = inlined_call_operand.vmem [shape: f32[1,8,16], index: 2, kind: output, shape index: {}]
  %s3 = sld [smem:[#allocation0]]
  $region26: #{nps_score.1} parent=0
    _
  %s5 = ssub.s32 1, %s3
  %s6 = scalar_select 0, %s5, %s3
  $region1: #{nps_score.1} parent=0
    #allocation2 [shape = 'u8[512]{0}', space=smem, size = 0x200, scoped, tag = 'input window, operand 0, single buffered']
    #allocation3 [shape = 's32[1]{0}', space=sflag, size = 0x4, scoped, tag = 'scoped memory for nps_score.1']
    #allocation4 [shape = 's32[1]{0}', space=sflag, size = 0x4, scoped, tag = 'scoped memory for nps_score.1']
    #allocation5 [shape = 'u8[24576]{0}', space=vmem, size = 0x6000, scoped, tag = 'input window, operand 1, single buffered']
    %7 = vsyncpa [#allocation4], 0
    %8 = vsyncpa [#allocation3], 0
    // Predicated region
    $region2: #{nps_score.1} parent=1 // pred_check
      _
    $region3: #{nps_score.1} parent=1 // pred_check_branch
      %10 = sbr.rel (0) target = $region5
    $region4: #{nps_score.1} parent=1 // pred_region
      %s12 = ssub.s32 16, 16
      %13 = vsyncadd [#allocation4], %s12
      %s15 = sshll.u32 %s0, 4
      %s16 = int_to_ptr.vmem [resolvable:$true] %s15
      %18 = dma.vmem_to_smem %s16, 16, [#allocation2], [#allocation4]
    $region5: #{nps_score.1} parent=1 // pred_fallthru
      _
    // Predicated region
    $region6: #{nps_score.1} parent=1 // pred_check
      _
    $region7: #{nps_score.1} parent=1 // pred_check_branch
      %20 = sbr.rel (0) target = $region9
    $region8: #{nps_score.1} parent=1 // pred_region
      %s22 = ssub.s32 768, 768
      %23 = vsyncadd [#allocation3], %s22
      %s24 = sshll.u32 [#allocation5], 4
      %s25 = int_to_ptr.vmem [resolvable:$true] %s24
      %30 = dma.hbm_to_vmem [thread:$0]  %s1, 768, %s25, [#allocation3], 128, 128, 8
    $region9: #{nps_score.1} parent=1 // pred_fallthru
      _
    // Predicated region
    $region10: #{nps_score.1} parent=1 // pred_check
      _
    $region11: #{nps_score.1} parent=1 // pred_check_branch
      %32 = sbr.rel (0) target = $region13
    $region12: #{nps_score.1} parent=1 // pred_region
      %33 = dma.done [#allocation4], 16
    $region13: #{nps_score.1} parent=1 // pred_fallthru
      _
    // Predicated region
    $region14: #{nps_score.1} parent=1 // pred_check
      _
    $region15: #{nps_score.1} parent=1 // pred_check_branch
      %35 = sbr.rel (0) target = $region17
    $region16: #{nps_score.1} parent=1 // pred_region
      %36 = dma.done [#allocation3], 768
    $region17: #{nps_score.1} parent=1 // pred_fallthru
      _
    %37 = sfence
    %v38 = vld [vmem:[#allocation5] sm:$0xff]
    %v39 = vld [vmem:[#allocation5 + $0x8] sm:$0xff]
    %v40 = vld [vmem:[#allocation5 + $0x10] sm:$0xff]
    %v41 = vld [vmem:[#allocation5 + $0x18] sm:$0xff]
    %v42 = vld [vmem:[#allocation5 + $0x20] sm:$0xff]
    %v43 = vld [vmem:[#allocation5 + $0x28] sm:$0xff]
    %v44 = vmul.f32 %v38, %v38
    %v45 = vmul.f32 %v39, %v39
    %v46 = vmul.f32 %v40, %v40
    %v47 = vmul.f32 %v41, %v41
    %v48 = vadd.f32 %v44, %v46
    %v49 = vadd.f32 %v45, %v47
    %v50 = vmul.f32 %v42, %v42
    %v51 = vmul.f32 %v43, %v43
    %v52 = vadd.f32 %v48, %v50
    %v53 = vadd.f32 %v49, %v51
    %s54 = sld [smem:[#allocation2]]
    %s55 = sld [smem:[#allocation2 + $0x1]]
    %s56 = sld [smem:[#allocation2 + $0x2]]
    %s57 = sld [smem:[#allocation2 + $0x3]]
    %v58 = vstv %s57
    %v59 = vadd.f32 %v52, %v58
    %v60 = vadd.f32 %v53, %v58
    %v61 = vstv %s54
    %v62 = vmul.f32 %v38, %v61
    %v63 = vmul.f32 %v39, %v61
    %v64 = vstv %s55
    %v65 = vmul.f32 %v40, %v64
    %v66 = vmul.f32 %v41, %v64
    %v67 = vadd.f32 %v62, %v65
    %v68 = vadd.f32 %v63, %v66
    %v69 = vstv %s56
    %v70 = vmul.f32 %v42, %v69
    %v71 = vmul.f32 %v43, %v69
    %v72 = vadd.f32 %v67, %v70
    %v73 = vadd.f32 %v68, %v71
    %v74 = vsub.f32 %v59, %v72
    %v75 = vsub.f32 %v60, %v73
    %s76 = sld [smem:[#allocation2 + $0x4]]
    %s77 = sld [smem:[#allocation2 + $0x5]]
    %s78 = sld [smem:[#allocation2 + $0x6]]
    %s79 = sld [smem:[#allocation2 + $0x7]]
    %v80 = vstv %s79
    %v81 = vadd.f32 %v52, %v80
    %v82 = vadd.f32 %v53, %v80
    %v83 = vstv %s76
    %v84 = vmul.f32 %v38, %v83
    %v85 = vmul.f32 %v39, %v83
    %v86 = vstv %s77
    %v87 = vmul.f32 %v40, %v86
    %v88 = vmul.f32 %v41, %v86
    %v89 = vadd.f32 %v84, %v87
    %v90 = vadd.f32 %v85, %v88
    %v91 = vstv %s78
    %v92 = vmul.f32 %v42, %v91
    %v93 = vmul.f32 %v43, %v91
    %v94 = vadd.f32 %v89, %v92
    %v95 = vadd.f32 %v90, %v93
    %v96 = vsub.f32 %v81, %v94
    %v97 = vsub.f32 %v82, %v95
    %v98 = vmin.f32 %v74, %v96
    %v99 = vmin.f32 %v75, %v97
    %s100 = sld [smem:[#allocation2 + $0x8]]
    %s101 = sld [smem:[#allocation2 + $0x9]]
    %s102 = sld [smem:[#allocation2 + $0xa]]
    %s103 = sld [smem:[#allocation2 + $0xb]]
    %v104 = vstv %s103
    %v105 = vadd.f32 %v52, %v104
    %v106 = vadd.f32 %v53, %v104
    %v107 = vstv %s100
    %v108 = vmul.f32 %v38, %v107
    %v109 = vmul.f32 %v39, %v107
    %v110 = vstv %s101
    %v111 = vmul.f32 %v40, %v110
    %v112 = vmul.f32 %v41, %v110
    %v113 = vadd.f32 %v108, %v111
    %v114 = vadd.f32 %v109, %v112
    %v115 = vstv %s102
    %v116 = vmul.f32 %v42, %v115
    %v117 = vmul.f32 %v43, %v115
    %v118 = vadd.f32 %v113, %v116
    %v119 = vadd.f32 %v114, %v117
    %v120 = vsub.f32 %v105, %v118
    %v121 = vsub.f32 %v106, %v119
    %v122 = vmin.f32 %v98, %v120
    %v123 = vmin.f32 %v99, %v121
    %s124 = sld [smem:[#allocation2 + $0xc]]
    %s125 = sld [smem:[#allocation2 + $0xd]]
    %s126 = sld [smem:[#allocation2 + $0xe]]
    %s127 = sld [smem:[#allocation2 + $0xf]]
    %v128 = vstv %s127
    %v129 = vadd.f32 %v52, %v128
    %v130 = vadd.f32 %v53, %v128
    %v131 = vstv %s124
    %v132 = vmul.f32 %v38, %v131
    %v133 = vmul.f32 %v39, %v131
    %v134 = vstv %s125
    %v135 = vmul.f32 %v40, %v134
    %v136 = vmul.f32 %v41, %v134
    %v137 = vadd.f32 %v132, %v135
    %v138 = vadd.f32 %v133, %v136
    %v139 = vstv %s126
    %v140 = vmul.f32 %v42, %v139
    %v141 = vmul.f32 %v43, %v139
    %v142 = vadd.f32 %v137, %v140
    %v143 = vadd.f32 %v138, %v141
    %v144 = vsub.f32 %v129, %v142
    %v145 = vsub.f32 %v130, %v143
    %v146 = vmin.f32 %v122, %v144
    %v147 = vmin.f32 %v123, %v145
    %s148 = sld [smem:[#allocation2 + $0x10]]
    %s149 = sld [smem:[#allocation2 + $0x11]]
    %s150 = sld [smem:[#allocation2 + $0x12]]
    %s151 = sld [smem:[#allocation2 + $0x13]]
    %v152 = vstv %s151
    %v153 = vadd.f32 %v52, %v152
    %v154 = vadd.f32 %v53, %v152
    %v155 = vstv %s148
    %v156 = vmul.f32 %v38, %v155
    %v157 = vmul.f32 %v39, %v155
    %v158 = vstv %s149
    %v159 = vmul.f32 %v40, %v158
    %v160 = vmul.f32 %v41, %v158
    %v161 = vadd.f32 %v156, %v159
    %v162 = vadd.f32 %v157, %v160
    %v163 = vstv %s150
    %v164 = vmul.f32 %v42, %v163
    %v165 = vmul.f32 %v43, %v163
    %v166 = vadd.f32 %v161, %v164
    %v167 = vadd.f32 %v162, %v165
    %v168 = vsub.f32 %v153, %v166
    %v169 = vsub.f32 %v154, %v167
    %v170 = vmin.f32 %v146, %v168
    %v171 = vmin.f32 %v147, %v169
    %s172 = sld [smem:[#allocation2 + $0x14]]
    %s173 = sld [smem:[#allocation2 + $0x15]]
    %s174 = sld [smem:[#allocation2 + $0x16]]
    %s175 = sld [smem:[#allocation2 + $0x17]]
    %v176 = vstv %s175
    %v177 = vadd.f32 %v52, %v176
    %v178 = vadd.f32 %v53, %v176
    %v179 = vstv %s172
    %v180 = vmul.f32 %v38, %v179
    %v181 = vmul.f32 %v39, %v179
    %v182 = vstv %s173
    %v183 = vmul.f32 %v40, %v182
    %v184 = vmul.f32 %v41, %v182
    %v185 = vadd.f32 %v180, %v183
    %v186 = vadd.f32 %v181, %v184
    %v187 = vstv %s174
    %v188 = vmul.f32 %v42, %v187
    %v189 = vmul.f32 %v43, %v187
    %v190 = vadd.f32 %v185, %v188
    %v191 = vadd.f32 %v186, %v189
    %v192 = vsub.f32 %v177, %v190
    %v193 = vsub.f32 %v178, %v191
    %v194 = vmin.f32 %v170, %v192
    %v195 = vmin.f32 %v171, %v193
    %s196 = sld [smem:[#allocation2 + $0x18]]
    %s197 = sld [smem:[#allocation2 + $0x19]]
    %s198 = sld [smem:[#allocation2 + $0x1a]]
    %s199 = sld [smem:[#allocation2 + $0x1b]]
    %v200 = vstv %s199
    %v201 = vadd.f32 %v52, %v200
    %v202 = vadd.f32 %v53, %v200
    %v203 = vstv %s196
    %v204 = vmul.f32 %v38, %v203
    %v205 = vmul.f32 %v39, %v203
    %v206 = vstv %s197
    %v207 = vmul.f32 %v40, %v206
    %v208 = vmul.f32 %v41, %v206
    %v209 = vadd.f32 %v204, %v207
    %v210 = vadd.f32 %v205, %v208
    %v211 = vstv %s198
    %v212 = vmul.f32 %v42, %v211
    %v213 = vmul.f32 %v43, %v211
    %v214 = vadd.f32 %v209, %v212
    %v215 = vadd.f32 %v210, %v213
    %v216 = vsub.f32 %v201, %v214
    %v217 = vsub.f32 %v202, %v215
    %v218 = vmin.f32 %v194, %v216
    %v219 = vmin.f32 %v195, %v217
    %s220 = sld [smem:[#allocation2 + $0x1c]]
    %s221 = sld [smem:[#allocation2 + $0x1d]]
    %s222 = sld [smem:[#allocation2 + $0x1e]]
    %s223 = sld [smem:[#allocation2 + $0x1f]]
    %v224 = vstv %s223
    %v225 = vadd.f32 %v52, %v224
    %v226 = vadd.f32 %v53, %v224
    %v227 = vstv %s220
    %v228 = vmul.f32 %v38, %v227
    %v229 = vmul.f32 %v39, %v227
    %v230 = vstv %s221
    %v231 = vmul.f32 %v40, %v230
    %v232 = vmul.f32 %v41, %v230
    %v233 = vadd.f32 %v228, %v231
    %v234 = vadd.f32 %v229, %v232
    %v235 = vstv %s222
    %v236 = vmul.f32 %v42, %v235
    %v237 = vmul.f32 %v43, %v235
    %v238 = vadd.f32 %v233, %v236
    %v239 = vadd.f32 %v234, %v237
    %v240 = vsub.f32 %v225, %v238
    %v241 = vsub.f32 %v226, %v239
    %v242 = vmin.f32 %v218, %v240
    %v243 = vmin.f32 %v219, %v241
    %v244 = vmax.f32 %v242, 0.0
    %v245 = vmax.f32 %v243, 0.0
    %v246 = vrsqrt.pop %v244
    %v247 = vmul.f32 %v244, %v246
    %vm248 = vcmp.eq.f32.partialorder %v244, inf
    %v249 = vsel %vm248, %v244, %v247
    %vm250 = vcmp.eq.f32.partialorder %v244, 0.0
    %v251 = vand.u32 %v244, 2147483648
    %v252 = vsel %vm250, %v251, %v249
    %v253 = vrsqrt.pop %v245
    %v254 = vmul.f32 %v245, %v253
    %vm255 = vcmp.eq.f32.partialorder %v245, inf
    %v256 = vsel %vm255, %v245, %v254
    %vm257 = vcmp.eq.f32.partialorder %v245, 0.0
    %v258 = vand.u32 %v245, 2147483648
    %v259 = vsel %vm257, %v258, %v256
    %v260 = vadd.f32 %v252, %v259
    %v261 = vadd.f32 %v260, 0.0
    %vm262 = vcmask 130048
    %263 = vst.msk [vmem:[%s2] sm:$0xff] %vm262, %v261
    // Predicated region
    $region18: #{nps_score.1} parent=1 // pred_check
      _
    $region19: #{nps_score.1} parent=1 // pred_check_branch
      %265 = sbr.rel (0) target = $region21
    $region20: #{nps_score.1} parent=1 // pred_region
      _
    $region21: #{nps_score.1} parent=1 // pred_fallthru
      _
    // Predicated region
    $region22: #{nps_score.1} parent=1 // pred_check
      _
    $region23: #{nps_score.1} parent=1 // pred_check_branch
      %267 = sbr.rel (0) target = $region25
    $region24: #{nps_score.1} parent=1 // pred_region
      _
    $region25: #{nps_score.1} parent=1 // pred_fallthru
      _
    %268 = vsyncpa [#allocation3], 1
    %269 = vsyncpa [#allocation4], 1

</llo_original>
